<compile_context>
chip_gen: v5e
topology: v5e:2x2
jax: 0.10.0
libtpu: 0.0.40
codegen_flags: <defaults>
</compile_context>

<pallas_src>
import jax
import jax.numpy as jnp
from jax.experimental import pallas as pl
from jax.experimental.pallas import tpu as pltpu


def mini_mlp_kernel(x_ref, w0_ref, w1_ref, o_ref):
    # Layer 0: (TM, 128) @ (128, 128) on the MXU, f32 accumulate, tanh on EUP.
    h = jnp.tanh(
        jnp.dot(x_ref[...], w0_ref[...], preferred_element_type=jnp.float32)
    )
    # Layer 1: out_features == 1 -> VPU multiply + lane reduction instead of a
    # wasteful N=1 MXU matmul.  w1_ref is (1, 128) and broadcasts over rows.
    y = jax.nn.sigmoid(jnp.sum(h * w1_ref[...], axis=-1, keepdims=True))
    o_ref[...] = y.astype(o_ref.dtype)


def _round_up(n, m):
    return ((n + m - 1) // m) * m


def mini_mlp(x, w0, w1, *, tm=256):
    """MiniMLP forward.

    x : (B, 128)   activations
    w0: (128, 128) torch Linear(128, 128).weight  (out, in)
    w1: (1, 128)   torch Linear(128, 1).weight    (out, in)
    returns (B, 1)
    """
    B, D = x.shape
    H, _ = w0.shape          # (128, 128)
    O, _ = w1.shape          # (1, 128)

    # Pre-transpose W0 once so the kernel computes x @ W0^T as x @ w0_t.
    w0_t = w0.T              # (D, H)

    # Batch tile: multiple of 8 (sublane constraint), capped at `tm` (256
    # fills the v6e/v7x MXU rows; small batches collapse to a single tile).
    TM = min(tm, max(8, _round_up(B, 8)))
    Bp = _round_up(B, TM)
    if Bp != B:
        x = jnp.pad(x, ((0, Bp - B), (0, 0)))

    out = pl.pallas_call(
        mini_mlp_kernel,
        out_shape=jax.ShapeDtypeStruct((Bp, O), x.dtype),
        grid=(Bp // TM,),
        in_specs=[
            pl.BlockSpec((TM, D), lambda i: (i, 0)),   # x tile streams
            pl.BlockSpec((D, H), lambda i: (0, 0)),    # W0^T: VMEM-resident
            pl.BlockSpec((O, H), lambda i: (0, 0)),    # W1 row: VMEM-resident
        ],
        out_specs=pl.BlockSpec((TM, O), lambda i: (i, 0)),
        compiler_params=pltpu.CompilerParams(
            dimension_semantics=("parallel",)          # megacore split on v7x
        ),
    )(x, w0_t, w1)

    return out[:B]


if __name__ == "__main__":
    key = jax.random.PRNGKey(0)
    kx, k0, k1 = jax.random.split(key, 3)

    B = 8  # small batch
    # torch.nn.Linear(128,128) weight: (out=128, in=128); Linear(128,1): (1,128)
    w0 = jax.random.uniform(k0, (128, 128), jnp.float32, -0.088, 0.088)
    w1 = jax.random.uniform(k1, (1, 128), jnp.float32, -0.088, 0.088)
    x = jax.random.normal(kx, (B, 128), jnp.float32)

    out = mini_mlp(x, w0, w1)
    out = jax.block_until_ready(out)

    # Reference check in plain JAX (same math as the PyTorch forward).
    ref = jax.nn.sigmoid(jnp.tanh(x @ w0.T) @ w1.T)
    assert out.shape == (B, 1)
    assert jnp.allclose(out, ref, atol=1e-5, rtol=1e-5)

    print("KERNEL_OK")
</pallas_src>

<mosaic_0001>
module attributes {stable_mosaic.version = 11 : i64} {
  func.func @mini_mlp_kernel(%arg0: i32, %arg1: memref<8x128xf32, #tpu.memory_space<vmem>>, %arg2: memref<128x128xf32, #tpu.memory_space<vmem>>, %arg3: memref<1x128xf32, #tpu.memory_space<vmem>>, %arg4: memref<8x1xf32, #tpu.memory_space<vmem>>) attributes {dimension_semantics = [#tpu.dimension_semantics<parallel>], iteration_bounds = array<i64: 1>, scalar_prefetch = 0 : i64, scratch_operands = 0 : i64, tpu.core_type = #tpu.core_type<tc>, window_params = [{transform_indices = @transform_0, window_bounds = array<i64: 8, 128>}, {pipeline_mode = #tpu.pipeline_mode<synchronous>, transform_indices = @transform_1, window_bounds = array<i64: 128, 128>}, {pipeline_mode = #tpu.pipeline_mode<synchronous>, transform_indices = @transform_2, window_bounds = array<i64: 1, 128>}, {transform_indices = @transform_3, window_bounds = array<i64: 8, 1>}]} {
    %c0 = arith.constant 0 : index
    %c0_0 = arith.constant 0 : index
    %0 = vector.load %arg1[%c0, %c0_0] : memref<8x128xf32, #tpu.memory_space<vmem>>, vector<8x128xf32>
    %c0_1 = arith.constant 0 : index
    %c0_2 = arith.constant 0 : index
    %1 = vector.load %arg2[%c0_1, %c0_2] : memref<128x128xf32, #tpu.memory_space<vmem>>, vector<128x128xf32>
    %cst = arith.constant dense<0.000000e+00> : vector<8x128xf32>
    %2 = tpu.matmul %0, %1, %cst {dimension_numbers = #tpu.dot_dimension_numbers<[1], [0], [0], [1], [0, 0, 1, 1], [], []>} : vector<8x128xf32>, vector<128x128xf32>, vector<8x128xf32> -> vector<8x128xf32>
    %3 = math.tanh %2 : vector<8x128xf32>
    %c0_3 = arith.constant 0 : index
    %c0_4 = arith.constant 0 : index
    %4 = vector.load %arg3[%c0_3, %c0_4] : memref<1x128xf32, #tpu.memory_space<vmem>>, vector<1x128xf32>
    %5 = vector.broadcast %4 : vector<1x128xf32> to vector<8x128xf32>
    %6 = arith.mulf %3, %5 : vector<8x128xf32>
    %cst_5 = arith.constant dense<0.000000e+00> : vector<8xf32>
    %7 = vector.multi_reduction <add>, %6, %cst_5 [1] : vector<8x128xf32> to vector<8xf32>
    %8 = vector.shape_cast %7 : vector<8xf32> to vector<8x1xf32>
    %9 = arith.negf %8 : vector<8x1xf32>
    %10 = math.exp %9 : vector<8x1xf32>
    %cst_6 = arith.constant 1.000000e+00 : f32
    %11 = vector.broadcast %cst_6 : f32 to vector<8x1xf32>
    %12 = arith.addf %11, %10 : vector<8x1xf32>
    %13 = arith.divf %11, %12 : vector<8x1xf32>
    %c0_7 = arith.constant 0 : index
    %c0_8 = arith.constant 0 : index
    %14 = vector.load %arg4[%c0_7, %c0_8] : memref<8x1xf32, #tpu.memory_space<vmem>>, vector<8x1xf32>
    tpu.vector_store %arg4[%c0_7, %c0_8], %13 {strides = array<i32>} : memref<8x1xf32, #tpu.memory_space<vmem>>, vector<8x1xf32>,
    return
  }
  func.func @transform_0(%arg0: i32) -> (i32, i32) {
    %c0_i32 = arith.constant 0 : i32
    %c0_i32_0 = arith.constant 0 : i32
    return %arg0, %c0_i32 : i32, i32
  }
  func.func @transform_1(%arg0: i32) -> (i32, i32) {
    %c0_i32 = arith.constant 0 : i32
    %c0_i32_0 = arith.constant 0 : i32
    %c0_i32_1 = arith.constant 0 : i32
    return %c0_i32, %c0_i32_0 : i32, i32
  }
  func.func @transform_2(%arg0: i32) -> (i32, i32) {
    %c0_i32 = arith.constant 0 : i32
    %c0_i32_0 = arith.constant 0 : i32
    %c0_i32_1 = arith.constant 0 : i32
    return %c0_i32, %c0_i32_0 : i32, i32
  }
  func.func @transform_3(%arg0: i32) -> (i32, i32) {
    %c0_i32 = arith.constant 0 : i32
    %c0_i32_0 = arith.constant 0 : i32
    return %arg0, %c0_i32 : i32, i32
  }
}

</mosaic_0001>

<llo_original>
// kernel: tpu_custom_call.1
$region0: #{tpu_custom_call.1}
  #allocation0 [shape = 'u32[]', space=smem, size = 0x4, offset = 0x4, fixed_abs, tag = 'smem constant byte address 0x4 - core index']
  #allocation1 [shape = 'u32[72,128]{1,0:T(1,128)}', space=vmem, size = 0x9000, scoped, tag = 'internal scratch']
  %s0 = inlined_call_operand.hbm [shape: f32[8,128], index: 0, kind: input, shape index: {}]
  %s1 = inlined_call_operand.hbm [shape: f32[128,128], index: 1, kind: input, shape index: {}]
  %s2 = inlined_call_operand.vmem [shape: f32[1,128], index: 2, kind: input, shape index: {}]
  %s3 = inlined_call_operand.vmem [shape: f32[8,1], index: 3, kind: output, shape index: {}]
  %s4 = sld [smem:[#allocation0]]
  $region30: #{tpu_custom_call.1} parent=0
    _
  %s6 = ssub.s32 1, %s4
  %s7 = scalar_select 0, %s6, %s4
  $region1: #{tpu_custom_call.1} parent=0
    #allocation2 [shape = 'u8[4096]{0}', space=vmem, size = 0x1000, scoped, tag = 'input window, operand 0, single buffered']
    #allocation3 [shape = 's32[1]{0}', space=sflag, size = 0x4, scoped, tag = 'scoped memory for tpu_custom_call.1']
    #allocation4 [shape = 'u8[65536]{0}', space=vmem, size = 0x10000, scoped, tag = 'input window, operand 1, single buffered']
    #allocation5 [shape = 's32[1]{0}', space=sflag, size = 0x4, scoped, tag = 'scoped memory for tpu_custom_call.1']
    %8 = vsyncpa [#allocation3], 0
    %9 = vsyncpa [#allocation5], 0
    // Predicated region
    $region2: #{tpu_custom_call.1} parent=1 // pred_check
      _
    $region3: #{tpu_custom_call.1} parent=1 // pred_check_branch
      %11 = sbr.rel (0) target = $region5
    $region4: #{tpu_custom_call.1} parent=1 // pred_region
      %13 = vsyncadd [#allocation3], 0
      %s15 = sshll.u32 %s0, 4
      %s16 = int_to_ptr.hbm [resolvable:$true] %s15
      %s17 = sshll.u32 [#allocation2], 4
      %s18 = int_to_ptr.vmem [resolvable:$true] %s17
      %20 = dma.hbm_to_vmem [thread:$0]  %s16, 128, %s18, [#allocation3]
    $region5: #{tpu_custom_call.1} parent=1 // pred_fallthru
      _
    // Predicated region
    $region6: #{tpu_custom_call.1} parent=1 // pred_check
      _
    $region7: #{tpu_custom_call.1} parent=1 // pred_check_branch
      %22 = sbr.rel (0) target = $region9
    $region8: #{tpu_custom_call.1} parent=1 // pred_region
      %24 = vsyncadd [#allocation5], 0
      %s25 = sshll.u32 %s1, 4
      %s26 = int_to_ptr.hbm [resolvable:$true] %s25
      %s27 = sshll.u32 [#allocation4], 4
      %s28 = int_to_ptr.vmem [resolvable:$true] %s27
      %33 = dma.hbm_to_vmem [thread:$0]  %s26, 2048, %s28, [#allocation5], 128, 128, 8
    $region9: #{tpu_custom_call.1} parent=1 // pred_fallthru
      _
    // Predicated region
    $region10: #{tpu_custom_call.1} parent=1 // pred_check
      _
    $region11: #{tpu_custom_call.1} parent=1 // pred_check_branch
      %35 = sbr.rel (0) target = $region13
    $region12: #{tpu_custom_call.1} parent=1 // pred_region
      _
    $region13: #{tpu_custom_call.1} parent=1 // pred_fallthru
      _
    // Predicated region
    $region14: #{tpu_custom_call.1} parent=1 // pred_check
      _
    $region15: #{tpu_custom_call.1} parent=1 // pred_check_branch
      %37 = sbr.rel (0) target = $region17
    $region16: #{tpu_custom_call.1} parent=1 // pred_region
      %39 = dma.done [#allocation3], 128
    $region17: #{tpu_custom_call.1} parent=1 // pred_fallthru
      _
    // Predicated region
    $region18: #{tpu_custom_call.1} parent=1 // pred_check
      _
    $region19: #{tpu_custom_call.1} parent=1 // pred_check_branch
      %41 = sbr.rel (0) target = $region21
    $region20: #{tpu_custom_call.1} parent=1 // pred_region
      %43 = dma.done [#allocation5], 2048
    $region21: #{tpu_custom_call.1} parent=1 // pred_fallthru
      _
    %v44 = vld [vmem:[#allocation2] sm:$0xff]
    %v45 = vld [vmem:[#allocation4] sm:$0xff]
    %v46 = vld [vmem:[#allocation4 + $0x8] sm:$0xff]
    %v47 = vld [vmem:[#allocation4 + $0x10] sm:$0xff]
    %v48 = vld [vmem:[#allocation4 + $0x18] sm:$0xff]
    %v49 = vld [vmem:[#allocation4 + $0x20] sm:$0xff]
    %v50 = vld [vmem:[#allocation4 + $0x28] sm:$0xff]
    %v51 = vld [vmem:[#allocation4 + $0x30] sm:$0xff]
    %v52 = vld [vmem:[#allocation4 + $0x38] sm:$0xff]
    %v53 = vld [vmem:[#allocation4 + $0x40] sm:$0xff]
    %v54 = vld [vmem:[#allocation4 + $0x48] sm:$0xff]
    %v55 = vld [vmem:[#allocation4 + $0x50] sm:$0xff]
    %v56 = vld [vmem:[#allocation4 + $0x58] sm:$0xff]
    %v57 = vld [vmem:[#allocation4 + $0x60] sm:$0xff]
    %v58 = vld [vmem:[#allocation4 + $0x68] sm:$0xff]
    %v59 = vld [vmem:[#allocation4 + $0x70] sm:$0xff]
    %v60 = vld [vmem:[#allocation4 + $0x78] sm:$0xff]
    %61 = vmatpush.msra.mxu0 %v60
    %62 = vmatpush.msra.mxu0 %v59
    %63 = vmatpush.msra.mxu0 %v58
    %64 = vmatpush.msra.mxu0 %v57
    %65 = vmatpush.msra.mxu0 %v56
    %66 = vmatpush.msra.mxu0 %v55
    %67 = vmatpush.msra.mxu0 %v54
    %68 = vmatpush.msra.mxu0 %v53
    %69 = vmatpush.msra.mxu0 %v52
    %70 = vmatpush.msra.mxu0 %v51
    %71 = vmatpush.msra.mxu0 %v50
    %72 = vmatpush.msra.mxu0 %v49
    %73 = vmatpush.msra.mxu0 %v48
    %74 = vmatpush.msra.mxu0 %v47
    %75 = vmatpush.msra.mxu0 %v46
    %76 = vmatpush.msra.mxu0 %v45
    %77 = vmatmul.f32.gmra.mxu0 %v44
    %v78 = vpop.f32.mrf.mxu0
    %v79 = vadd.f32 0.0, %v78
    %80 = vdwg.mxu0
    %v81 = vtanh.pop %v79
    %v82 = vld [vmem:[%s2] sm:$0x1]
    %v84 = vperm.slane %v82, 0
    %v86 = vmul.f32 %v81, %v84
    %87 = vadd.xlane.f32.xlu0 %v86
    %v88 = vpop.xlane.xlu0 %87
    %v89 = vxor.u32 %v88, 2147483648
    %v90 = vmul.f32 %v89, 1.442695
    %v91 = vpow.pop %v90
    %v92 = vadd.f32 %v91, 1.0
    %v93 = vrcp.pop %v92
    %v94 = vmul.f32 %v92, %v93
    %v95 = vsub.f32 1.0, %v94
    %v96 = vmul.f32 %v93, %v95
    %v97 = vadd.f32 %v93, %v96
    %vm98 = vweird.f32 %v92
    %vm99 = vweird.f32 %v93
    %vm100 = vmor %vm98, %vm99
    %v101 = vsel %vm100, %v93, %v97
    %v102 = vand.u32 2147483647, %v92
    %vm103 = vcmp.eq.f32.partialorder %v102, 8.507059e+37
    %v104 = vand.u32 %v92, 2147483648
    %v105 = vor.u32 1.1754944e-38, %v104
    %v106 = vsel %vm103, %v105, %v101
    %v107 = vmul.f32 1.0, %v106
    %vm108 = vcmask 7168
    %109 = vst.msk [vmem:[%s3] sm:$0xff] %vm108, %v107
    // Predicated region
    $region22: #{tpu_custom_call.1} parent=1 // pred_check
      _
    $region23: #{tpu_custom_call.1} parent=1 // pred_check_branch
      %111 = sbr.rel (0) target = $region25
    $region24: #{tpu_custom_call.1} parent=1 // pred_region
      _
    $region25: #{tpu_custom_call.1} parent=1 // pred_fallthru
      _
    // Predicated region
    $region26: #{tpu_custom_call.1} parent=1 // pred_check
      _
    $region27: #{tpu_custom_call.1} parent=1 // pred_check_branch
      %113 = sbr.rel (0) target = $region29
    $region28: #{tpu_custom_call.1} parent=1 // pred_region
      _
    $region29: #{tpu_custom_call.1} parent=1 // pred_fallthru
      _
    %114 = vsyncpa [#allocation3], 1
    %115 = vsyncpa [#allocation5], 1

</llo_original>
